<compile_context>
chip_gen: v6e
topology: v6e:2x2x1
jax: 0.10.0
libtpu: 0.0.40
codegen_flags: <defaults>
</compile_context>

<pallas_src>
import jax
import jax.numpy as jnp
from jax.experimental import pallas as pl
from jax.experimental.pallas import tpu as pltpu


def _round_up(x, m):
    return (x + m - 1) // m * m


def _cdiv(a, b):
    return (a + b - 1) // b


def _device_kind():
    try:
        return jax.devices()[0].device_kind.lower()
    except Exception:
        return ""


def _vmem_capacity_bytes():
    try:
        return int(pltpu.get_tpu_info().vmem_capacity_bytes)
    except Exception:
        return 64 << 20  # conservative default (v7x per-core VMEM)


def _mlp_kernel(x_ref, w1_ref, b1_ref, w2_ref, b2_ref, w3_ref, b3_ref,
                o_ref, h2_ref):
    # Layers 1 and 2 run once per batch tile: the N (output-column) grid axis
    # is the innermost loop, so j == 0 is the first visit of this batch tile.
    @pl.when(pl.program_id(1) == 0)
    def _():
        h1 = jnp.dot(x_ref[...], w1_ref[...],
                     preferred_element_type=jnp.float32)
        h1 = jnp.maximum(h1 + b1_ref[...], 0.0)
        h2 = jnp.dot(h1.astype(jnp.bfloat16), w2_ref[...],
                     preferred_element_type=jnp.float32)
        h2 = jnp.maximum(h2 + b2_ref[...], 0.0)
        h2_ref[...] = h2.astype(jnp.bfloat16)

    # Layer 3 for this (batch tile, output-column tile). bf16 operands, f32 acc.
    out = jnp.dot(h2_ref[...], w3_ref[...], preferred_element_type=jnp.float32)
    o_ref[...] = (out + b3_ref[...]).astype(o_ref.dtype)


def prepare_params(params, *, mel_dim, time_steps, target_tile_n=512):
    """One-time weight preprocessing (hoisted out of the per-call forward).

    Pads H to a multiple of 128 and O to n_n * tile_n (zero padding is
    numerically exact: padded hidden units are relu(0) = 0 and padded W3
    rows/columns are zero, and padded output columns are sliced off).
    Matmul operands are cast to bf16 once; biases stay f32.
    """
    w1, b1, w2, b2, w3, b3 = params
    E, H = w1.shape
    O = w3.shape[1]
    assert O == mel_dim * time_steps

    H_pad = _round_up(H, 128)
    O_128 = _round_up(O, 128)
    n_n = _cdiv(O_128, target_tile_n)
    tile_n = _round_up(_cdiv(O_128, n_n), 128)
    O_pad = n_n * tile_n
    dH = H_pad - H

    w1p = jnp.pad(w1, ((0, 0), (0, dH))).astype(jnp.bfloat16)
    b1p = jnp.pad(b1, ((0, 0), (0, dH)))
    w2p = jnp.pad(w2, ((0, dH), (0, dH))).astype(jnp.bfloat16)
    b2p = jnp.pad(b2, ((0, 0), (0, dH)))
    w3p = jnp.pad(w3, ((0, dH), (0, O_pad - O))).astype(jnp.bfloat16)
    b3p = jnp.pad(b3, ((0, 0), (0, O_pad - O)))
    return dict(w1=w1p, b1=b1p, w2=w2p, b2=b2p, w3=w3p, b3=b3p,
                E=E, H_pad=H_pad, O=O, O_pad=O_pad, tile_n=tile_n, n_n=n_n)


def _build_call(*, tile_b, n_b, tile_n, n_n, E, H_pad, O_pad, B_pad,
                vmem_bytes, flops, bytes_accessed, single_buffer_weights):
    if single_buffer_weights:
        def const_spec(shape):
            return pl.BlockSpec(shape, lambda i, j: (0, 0),
                                pipeline_mode=pl.Buffered(1))
    else:
        def const_spec(shape):
            return pl.BlockSpec(shape, lambda i, j: (0, 0))

    return pl.pallas_call(
        _mlp_kernel,
        out_shape=jax.ShapeDtypeStruct((B_pad, O_pad), jnp.float32),
        grid=(n_b, n_n),
        in_specs=[
            pl.BlockSpec((tile_b, E), lambda i, j: (i, 0)),      # x (batch-tiled)
            const_spec((E, H_pad)),                              # w1 (resident)
            const_spec((1, H_pad)),                              # b1 (resident)
            const_spec((H_pad, H_pad)),                          # w2 (resident)
            const_spec((1, H_pad)),                              # b2 (resident)
            pl.BlockSpec((H_pad, tile_n), lambda i, j: (0, j)),  # w3 (streamed over N)
            pl.BlockSpec((1, tile_n), lambda i, j: (0, j)),      # b3 (streamed over N)
        ],
        out_specs=pl.BlockSpec((tile_b, tile_n), lambda i, j: (i, j)),
        scratch_shapes=[pltpu.VMEM((tile_b, H_pad), jnp.bfloat16)],  # cached h2
        compiler_params=pltpu.CompilerParams(
            # N axis must stay "arbitrary": h2 scratch written at j == 0 is
            # reused by later j steps of the same batch tile.
            dimension_semantics=("parallel", "arbitrary"),
            vmem_limit_bytes=vmem_bytes,
        ),
        cost_estimate=pl.CostEstimate(
            flops=flops, transcendentals=0, bytes_accessed=bytes_accessed),
    )


def embedding_to_mel_mlp(x, prep, *, mel_dim, time_steps):
    """Pallas forward of EmbeddingToMelMLP.

    x: (B, embedding_dim) float32, prep: output of prepare_params().
    returns: (B, mel_dim, time_steps) float32
    """
    B, E = x.shape
    assert E == prep["E"] and prep["O"] == mel_dim * time_steps
    H_pad, O_pad = prep["H_pad"], prep["O_pad"]
    tile_n, n_n = prep["tile_n"], prep["n_n"]

    # Balanced, generation-aware batch tiling (granularity 16 = bf16 pack size).
    kind = _device_kind()
    max_tb = 128 if "v5" in kind else 256  # v5e MXU pass is 128 rows
    g = 16
    B_g = _round_up(B, g)
    n_b = _cdiv(B_g, max_tb)
    tile_b = _round_up(_cdiv(B_g, n_b), g)
    B_pad = n_b * tile_b

    x_bf = x.astype(jnp.bfloat16)
    if B_pad != B:
        x_bf = jnp.pad(x_bf, ((0, B_pad - B), (0, 0)))

    # VMEM footprint (bytes).  Resident weights budgeted x2 so the estimate is
    # valid even on the double-buffered fallback path.
    resident = 2 * (2 * (E * H_pad + H_pad * H_pad) + 4 * 2 * H_pad)
    streamed = 2 * (2 * H_pad * tile_n + 4 * tile_n)        # w3/b3, double-buffered
    io_tiles = 2 * (2 * tile_b * E) + 2 * (4 * tile_b * tile_n)  # x / out tiles
    scratch = 2 * tile_b * H_pad                            # bf16 h2 cache
    live = 2 * 4 * tile_b * H_pad + 4 * tile_b * tile_n     # f32 h1/h2 + layer-3 acc
    footprint = resident + streamed + io_tiles + scratch + live
    cap = _vmem_capacity_bytes() * 4 // 5
    vmem_bytes = int(min(max(footprint * 5 // 4 + (2 << 20), 8 << 20), cap))

    flops = 2 * B_pad * (E * H_pad + H_pad * H_pad + H_pad * O_pad)
    bytes_accessed = (2 * B_pad * E + resident
                      + n_b * (2 * H_pad * O_pad + 4 * O_pad)
                      + 4 * B_pad * O_pad)

    kwargs = dict(tile_b=tile_b, n_b=n_b, tile_n=tile_n, n_n=n_n, E=E,
                  H_pad=H_pad, O_pad=O_pad, B_pad=B_pad, vmem_bytes=vmem_bytes,
                  flops=flops, bytes_accessed=bytes_accessed)
    args = (x_bf, prep["w1"], prep["b1"], prep["w2"], prep["b2"],
            prep["w3"], prep["b3"])
    try:
        flat = _build_call(single_buffer_weights=True, **kwargs)(*args)
    except Exception:
        # Fallback if this JAX build rejects pl.Buffered(1) on the top-level
        # pipeline; budget above already covers double-buffered weights.
        flat = _build_call(single_buffer_weights=False, **kwargs)(*args)

    return flat[:B, :prep["O"]].reshape(B, mel_dim, time_steps)


def init_params(key, embedding_dim, hidden_dim, mel_dim, time_steps):
    k1, k2, k3, k4, k5, k6 = jax.random.split(key, 6)
    out_dim = mel_dim * time_steps
    s1 = 1.0 / jnp.sqrt(embedding_dim)
    s2 = 1.0 / jnp.sqrt(hidden_dim)
    w1 = jax.random.uniform(k1, (embedding_dim, hidden_dim), jnp.float32, -s1, s1)
    b1 = jax.random.uniform(k2, (1, hidden_dim), jnp.float32, -s1, s1)
    w2 = jax.random.uniform(k3, (hidden_dim, hidden_dim), jnp.float32, -s2, s2)
    b2 = jax.random.uniform(k4, (1, hidden_dim), jnp.float32, -s2, s2)
    w3 = jax.random.uniform(k5, (hidden_dim, out_dim), jnp.float32, -s2, s2)
    b3 = jax.random.uniform(k6, (1, out_dim), jnp.float32, -s2, s2)
    return (w1, b1, w2, b2, w3, b3)


if __name__ == "__main__":
    # Small shapes consistent with the module's forward.
    batch = 2
    embedding_dim = 32
    hidden_dim = 64
    mel_dim = 8
    time_steps = 16

    key = jax.random.PRNGKey(0)
    kx, kp = jax.random.split(key)
    x = jax.random.normal(kx, (batch, embedding_dim), jnp.float32)
    params = init_params(kp, embedding_dim, hidden_dim, mel_dim, time_steps)

    # One-time weight preprocessing (padding + bf16 casts) hoisted out of the
    # forward pass.
    prep = prepare_params(params, mel_dim=mel_dim, time_steps=time_steps)

    out = embedding_to_mel_mlp(x, prep, mel_dim=mel_dim, time_steps=time_steps)
    out = jax.block_until_ready(out)

    # Reference in plain JAX, matching the kernel's bf16-operand / f32-accumulate
    # numerics (inputs, weights, and inter-layer activations rounded to bf16).
    w1, b1, w2, b2, w3, b3 = params
    bf = lambda a: a.astype(jnp.bfloat16).astype(jnp.float32)
    h = jnp.maximum(bf(x) @ bf(w1) + b1, 0.0)
    h = jnp.maximum(bf(h) @ bf(w2) + b2, 0.0)
    ref = (bf(h) @ bf(w3) + b3).reshape(batch, mel_dim, time_steps)

    assert out.shape == (batch, mel_dim, time_steps)
    assert jnp.allclose(out, ref, atol=1e-3, rtol=1e-3)

    print("KERNEL_OK")
</pallas_src>

<mosaic_0001>
module attributes {stable_mosaic.version = 11 : i64} {
  func.func @_mlp_kernel(%arg0: i32, %arg1: i32, %arg2: memref<16x32xbf16, #tpu.memory_space<vmem>>, %arg3: memref<32x128xbf16, #tpu.memory_space<vmem>>, %arg4: memref<1x128xf32, #tpu.memory_space<vmem>>, %arg5: memref<128x128xbf16, #tpu.memory_space<vmem>>, %arg6: memref<1x128xf32, #tpu.memory_space<vmem>>, %arg7: memref<128x128xbf16, #tpu.memory_space<vmem>>, %arg8: memref<1x128xf32, #tpu.memory_space<vmem>>, %arg9: memref<16x128xf32, #tpu.memory_space<vmem>>, %arg10: memref<16x128xbf16, #tpu.memory_space<vmem>>) attributes {dimension_semantics = [#tpu.dimension_semantics<parallel>, #tpu.dimension_semantics<arbitrary>], iteration_bounds = array<i64: 1, 1>, scalar_prefetch = 0 : i64, scratch_operands = 1 : i64, tpu.core_type = #tpu.core_type<tc>, window_params = [{transform_indices = @transform_0, window_bounds = array<i64: 16, 32>}, {pipeline_mode = #tpu.pipeline_mode<synchronous>, transform_indices = @transform_1, window_bounds = array<i64: 32, 128>}, {pipeline_mode = #tpu.pipeline_mode<synchronous>, transform_indices = @transform_2, window_bounds = array<i64: 1, 128>}, {pipeline_mode = #tpu.pipeline_mode<synchronous>, transform_indices = @transform_3, window_bounds = array<i64: 128, 128>}, {pipeline_mode = #tpu.pipeline_mode<synchronous>, transform_indices = @transform_4, window_bounds = array<i64: 1, 128>}, {transform_indices = @transform_5, window_bounds = array<i64: 128, 128>}, {transform_indices = @transform_6, window_bounds = array<i64: 1, 128>}, {transform_indices = @transform_7, window_bounds = array<i64: 16, 128>}]} {
    %c0_i32 = arith.constant 0 : i32
    %0 = arith.cmpi eq, %arg1, %c0_i32 : i32
    %1 = arith.extui %0 : i1 to i32
    %c0_i32_0 = arith.constant 0 : i32
    %2 = arith.cmpi ne, %1, %c0_i32_0 : i32
    scf.if %2 {
      %c0_8 = arith.constant 0 : index
      %c0_9 = arith.constant 0 : index
      %10 = vector.load %arg2[%c0_8, %c0_9] : memref<16x32xbf16, #tpu.memory_space<vmem>>, vector<16x32xbf16>
      %c0_10 = arith.constant 0 : index
      %c0_11 = arith.constant 0 : index
      %11 = vector.load %arg3[%c0_10, %c0_11] : memref<32x128xbf16, #tpu.memory_space<vmem>>, vector<32x128xbf16>
      %cst_12 = arith.constant dense<0.000000e+00> : vector<16x128xf32>
      %12 = tpu.matmul %10, %11, %cst_12 {dimension_numbers = #tpu.dot_dimension_numbers<[1], [0], [0], [1], [0, 0, 1, 1], [], []>} : vector<16x32xbf16>, vector<32x128xbf16>, vector<16x128xf32> -> vector<16x128xf32>
      %c0_13 = arith.constant 0 : index
      %c0_14 = arith.constant 0 : index
      %13 = vector.load %arg4[%c0_13, %c0_14] : memref<1x128xf32, #tpu.memory_space<vmem>>, vector<1x128xf32>
      %14 = vector.broadcast %13 : vector<1x128xf32> to vector<16x128xf32>
      %15 = arith.addf %12, %14 : vector<16x128xf32>
      %cst_15 = arith.constant 0.000000e+00 : f32
      %16 = vector.broadcast %cst_15 : f32 to vector<16x128xf32>
      %17 = arith.maximumf %15, %16 : vector<16x128xf32>
      %18 = arith.truncf %17 : vector<16x128xf32> to vector<16x128xbf16>
      %c0_16 = arith.constant 0 : index
      %c0_17 = arith.constant 0 : index
      %19 = vector.load %arg5[%c0_16, %c0_17] : memref<128x128xbf16, #tpu.memory_space<vmem>>, vector<128x128xbf16>
      %cst_18 = arith.constant dense<0.000000e+00> : vector<16x128xf32>
      %20 = tpu.matmul %18, %19, %cst_18 {dimension_numbers = #tpu.dot_dimension_numbers<[1], [0], [0], [1], [0, 0, 1, 1], [], []>} : vector<16x128xbf16>, vector<128x128xbf16>, vector<16x128xf32> -> vector<16x128xf32>
      %c0_19 = arith.constant 0 : index
      %c0_20 = arith.constant 0 : index
      %21 = vector.load %arg6[%c0_19, %c0_20] : memref<1x128xf32, #tpu.memory_space<vmem>>, vector<1x128xf32>
      %22 = vector.broadcast %21 : vector<1x128xf32> to vector<16x128xf32>
      %23 = arith.addf %20, %22 : vector<16x128xf32>
      %cst_21 = arith.constant 0.000000e+00 : f32
      %24 = vector.broadcast %cst_21 : f32 to vector<16x128xf32>
      %25 = arith.maximumf %23, %24 : vector<16x128xf32>
      %26 = arith.truncf %25 : vector<16x128xf32> to vector<16x128xbf16>
      %c0_22 = arith.constant 0 : index
      %c0_23 = arith.constant 0 : index
      %27 = vector.load %arg10[%c0_22, %c0_23] : memref<16x128xbf16, #tpu.memory_space<vmem>>, vector<16x128xbf16>
      tpu.vector_store %arg10[%c0_22, %c0_23], %26 {strides = array<i32>} : memref<16x128xbf16, #tpu.memory_space<vmem>>, vector<16x128xbf16>,
    } else {
    }
    %c0 = arith.constant 0 : index
    %c0_1 = arith.constant 0 : index
    %3 = vector.load %arg10[%c0, %c0_1] : memref<16x128xbf16, #tpu.memory_space<vmem>>, vector<16x128xbf16>
    %c0_2 = arith.constant 0 : index
    %c0_3 = arith.constant 0 : index
    %4 = vector.load %arg7[%c0_2, %c0_3] : memref<128x128xbf16, #tpu.memory_space<vmem>>, vector<128x128xbf16>
    %cst = arith.constant dense<0.000000e+00> : vector<16x128xf32>
    %5 = tpu.matmul %3, %4, %cst {dimension_numbers = #tpu.dot_dimension_numbers<[1], [0], [0], [1], [0, 0, 1, 1], [], []>} : vector<16x128xbf16>, vector<128x128xbf16>, vector<16x128xf32> -> vector<16x128xf32>
    %c0_4 = arith.constant 0 : index
    %c0_5 = arith.constant 0 : index
    %6 = vector.load %arg8[%c0_4, %c0_5] : memref<1x128xf32, #tpu.memory_space<vmem>>, vector<1x128xf32>
    %7 = vector.broadcast %6 : vector<1x128xf32> to vector<16x128xf32>
    %8 = arith.addf %5, %7 : vector<16x128xf32>
    %c0_6 = arith.constant 0 : index
    %c0_7 = arith.constant 0 : index
    %9 = vector.load %arg9[%c0_6, %c0_7] : memref<16x128xf32, #tpu.memory_space<vmem>>, vector<16x128xf32>
    tpu.vector_store %arg9[%c0_6, %c0_7], %8 {strides = array<i32>} : memref<16x128xf32, #tpu.memory_space<vmem>>, vector<16x128xf32>,
    return
  }
  func.func @transform_0(%arg0: i32, %arg1: i32) -> (i32, i32) {
    %c0_i32 = arith.constant 0 : i32
    %c0_i32_0 = arith.constant 0 : i32
    return %arg0, %c0_i32 : i32, i32
  }
  func.func @transform_1(%arg0: i32, %arg1: i32) -> (i32, i32) {
    %c0_i32 = arith.constant 0 : i32
    %c0_i32_0 = arith.constant 0 : i32
    %c0_i32_1 = arith.constant 0 : i32
    return %c0_i32, %c0_i32_0 : i32, i32
  }
  func.func @transform_2(%arg0: i32, %arg1: i32) -> (i32, i32) {
    %c0_i32 = arith.constant 0 : i32
    %c0_i32_0 = arith.constant 0 : i32
    %c0_i32_1 = arith.constant 0 : i32
    return %c0_i32, %c0_i32_0 : i32, i32
  }
  func.func @transform_3(%arg0: i32, %arg1: i32) -> (i32, i32) {
    %c0_i32 = arith.constant 0 : i32
    %c0_i32_0 = arith.constant 0 : i32
    %c0_i32_1 = arith.constant 0 : i32
    return %c0_i32, %c0_i32_0 : i32, i32
  }
  func.func @transform_4(%arg0: i32, %arg1: i32) -> (i32, i32) {
    %c0_i32 = arith.constant 0 : i32
    %c0_i32_0 = arith.constant 0 : i32
    %c0_i32_1 = arith.constant 0 : i32
    return %c0_i32, %c0_i32_0 : i32, i32
  }
  func.func @transform_5(%arg0: i32, %arg1: i32) -> (i32, i32) {
    %c0_i32 = arith.constant 0 : i32
    %c0_i32_0 = arith.constant 0 : i32
    return %c0_i32, %arg1 : i32, i32
  }
  func.func @transform_6(%arg0: i32, %arg1: i32) -> (i32, i32) {
    %c0_i32 = arith.constant 0 : i32
    %c0_i32_0 = arith.constant 0 : i32
    return %c0_i32, %arg1 : i32, i32
  }
  func.func @transform_7(%arg0: i32, %arg1: i32) -> (i32, i32) {
    %c0_i32 = arith.constant 0 : i32
    return %arg0, %arg1 : i32, i32
  }
}

module attributes {stable_mosaic.version = 11 : i64} {
  func.func @_mlp_kernel(%arg0: i32, %arg1: i32, %arg2: memref<16x32xbf16, #tpu.memory_space<vmem>>, %arg3: memref<32x128xbf16, #tpu.memory_space<vmem>>, %arg4: memref<1x128xf32, #tpu.memory_space<vmem>>, %arg5: memref<128x128xbf16, #tpu.memory_space<vmem>>, %arg6: memref<1x128xf32, #tpu.memory_space<vmem>>, %arg7: memref<128x128xbf16, #tpu.memory_space<vmem>>, %arg8: memref<1x128xf32, #tpu.memory_space<vmem>>, %arg9: memref<16x128xf32, #tpu.memory_space<vmem>>, %arg10: memref<16x128xbf16, #tpu.memory_space<vmem>>) attributes {dimension_semantics = [#tpu.dimension_semantics<parallel>, #tpu.dimension_semantics<arbitrary>], iteration_bounds = array<i64: 1, 1>, scalar_prefetch = 0 : i64, scratch_operands = 1 : i64, tpu.core_type = #tpu.core_type<tc>, window_params = [{transform_indices = @transform_0, window_bounds = array<i64: 16, 32>}, {pipeline_mode = #tpu.pipeline_mode<synchronous>, transform_indices = @transform_1, window_bounds = array<i64: 32, 128>}, {pipeline_mode = #tpu.pipeline_mode<synchronous>, transform_indices = @transform_2, window_bounds = array<i64: 1, 128>}, {pipeline_mode = #tpu.pipeline_mode<synchronous>, transform_indices = @transform_3, window_bounds = array<i64: 128, 128>}, {pipeline_mode = #tpu.pipeline_mode<synchronous>, transform_indices = @transform_4, window_bounds = array<i64: 1, 128>}, {transform_indices = @transform_5, window_bounds = array<i64: 128, 128>}, {transform_indices = @transform_6, window_bounds = array<i64: 1, 128>}, {transform_indices = @transform_7, window_bounds = array<i64: 16, 128>}]} {
    %c0_i32 = arith.constant 0 : i32
    %0 = arith.cmpi eq, %arg1, %c0_i32 : i32
    %1 = arith.extui %0 : i1 to i32
    %c0_i32_0 = arith.constant 0 : i32
    %2 = arith.cmpi ne, %1, %c0_i32_0 : i32
    scf.if %2 {
      %c0_8 = arith.constant 0 : index
      %c0_9 = arith.constant 0 : index
      %10 = vector.load %arg2[%c0_8, %c0_9] : memref<16x32xbf16, #tpu.memory_space<vmem>>, vector<16x32xbf16>
      %c0_10 = arith.constant 0 : index
      %c0_11 = arith.constant 0 : index
      %11 = vector.load %arg3[%c0_10, %c0_11] : memref<32x128xbf16, #tpu.memory_space<vmem>>, vector<32x128xbf16>
      %cst_12 = arith.constant dense<0.000000e+00> : vector<16x128xf32>
      %12 = tpu.matmul %10, %11, %cst_12 {dimension_numbers = #tpu.dot_dimension_numbers<[1], [0], [0], [1], [0, 0, 1, 1], [], []>} : vector<16x32xbf16>, vector<32x128xbf16>, vector<16x128xf32> -> vector<16x128xf32>
      %c0_13 = arith.constant 0 : index
      %c0_14 = arith.constant 0 : index
      %13 = vector.load %arg4[%c0_13, %c0_14] : memref<1x128xf32, #tpu.memory_space<vmem>>, vector<1x128xf32>
      %14 = vector.broadcast %13 : vector<1x128xf32> to vector<16x128xf32>
      %15 = arith.addf %12, %14 : vector<16x128xf32>
      %cst_15 = arith.constant 0.000000e+00 : f32
      %16 = vector.broadcast %cst_15 : f32 to vector<16x128xf32>
      %17 = arith.maximumf %15, %16 : vector<16x128xf32>
      %18 = arith.truncf %17 : vector<16x128xf32> to vector<16x128xbf16>
      %c0_16 = arith.constant 0 : index
      %c0_17 = arith.constant 0 : index
      %19 = vector.load %arg5[%c0_16, %c0_17] : memref<128x128xbf16, #tpu.memory_space<vmem>>, vector<128x128xbf16>
      %cst_18 = arith.constant dense<0.000000e+00> : vector<16x128xf32>
      %20 = tpu.matmul %18, %19, %cst_18 {dimension_numbers = #tpu.dot_dimension_numbers<[1], [0], [0], [1], [0, 0, 1, 1], [], []>} : vector<16x128xbf16>, vector<128x128xbf16>, vector<16x128xf32> -> vector<16x128xf32>
      %c0_19 = arith.constant 0 : index
      %c0_20 = arith.constant 0 : index
      %21 = vector.load %arg6[%c0_19, %c0_20] : memref<1x128xf32, #tpu.memory_space<vmem>>, vector<1x128xf32>
      %22 = vector.broadcast %21 : vector<1x128xf32> to vector<16x128xf32>
      %23 = arith.addf %20, %22 : vector<16x128xf32>
      %cst_21 = arith.constant 0.000000e+00 : f32
      %24 = vector.broadcast %cst_21 : f32 to vector<16x128xf32>
      %25 = arith.maximumf %23, %24 : vector<16x128xf32>
      %26 = arith.truncf %25 : vector<16x128xf32> to vector<16x128xbf16>
      %c0_22 = arith.constant 0 : index
      %c0_23 = arith.constant 0 : index
      %27 = vector.load %arg10[%c0_22, %c0_23] : memref<16x128xbf16, #tpu.memory_space<vmem>>, vector<16x128xbf16>
      tpu.vector_store %arg10[%c0_22, %c0_23], %26 {strides = array<i32>} : memref<16x128xbf16, #tpu.memory_space<vmem>>, vector<16x128xbf16>,
    } else {
    }
    %c0 = arith.constant 0 : index
    %c0_1 = arith.constant 0 : index
    %3 = vector.load %arg10[%c0, %c0_1] : memref<16x128xbf16, #tpu.memory_space<vmem>>, vector<16x128xbf16>
    %c0_2 = arith.constant 0 : index
    %c0_3 = arith.constant 0 : index
    %4 = vector.load %arg7[%c0_2, %c0_3] : memref<128x128xbf16, #tpu.memory_space<vmem>>, vector<128x128xbf16>
    %cst = arith.constant dense<0.000000e+00> : vector<16x128xf32>
    %5 = tpu.matmul %3, %4, %cst {dimension_numbers = #tpu.dot_dimension_numbers<[1], [0], [0], [1], [0, 0, 1, 1], [], []>} : vector<16x128xbf16>, vector<128x128xbf16>, vector<16x128xf32> -> vector<16x128xf32>
    %c0_4 = arith.constant 0 : index
    %c0_5 = arith.constant 0 : index
    %6 = vector.load %arg8[%c0_4, %c0_5] : memref<1x128xf32, #tpu.memory_space<vmem>>, vector<1x128xf32>
    %7 = vector.broadcast %6 : vector<1x128xf32> to vector<16x128xf32>
    %8 = arith.addf %5, %7 : vector<16x128xf32>
    %c0_6 = arith.constant 0 : index
    %c0_7 = arith.constant 0 : index
    %9 = vector.load %arg9[%c0_6, %c0_7] : memref<16x128xf32, #tpu.memory_space<vmem>>, vector<16x128xf32>
    tpu.vector_store %arg9[%c0_6, %c0_7], %8 {strides = array<i32>} : memref<16x128xf32, #tpu.memory_space<vmem>>, vector<16x128xf32>,
    return
  }
  func.func @transform_0(%arg0: i32, %arg1: i32) -> (i32, i32) {
    %c0_i32 = arith.constant 0 : i32
    %c0_i32_0 = arith.constant 0 : i32
    return %arg0, %c0_i32 : i32, i32
  }
  func.func @transform_1(%arg0: i32, %arg1: i32) -> (i32, i32) {
    %c0_i32 = arith.constant 0 : i32
    %c0_i32_0 = arith.constant 0 : i32
    %c0_i32_1 = arith.constant 0 : i32
    return %c0_i32, %c0_i32_0 : i32, i32
  }
  func.func @transform_2(%arg0: i32, %arg1: i32) -> (i32, i32) {
    %c0_i32 = arith.constant 0 : i32
    %c0_i32_0 = arith.constant 0 : i32
    %c0_i32_1 = arith.constant 0 : i32
    return %c0_i32, %c0_i32_0 : i32, i32
  }
  func.func @transform_3(%arg0: i32, %arg1: i32) -> (i32, i32) {
    %c0_i32 = arith.constant 0 : i32
    %c0_i32_0 = arith.constant 0 : i32
    %c0_i32_1 = arith.constant 0 : i32
    return %c0_i32, %c0_i32_0 : i32, i32
  }
  func.func @transform_4(%arg0: i32, %arg1: i32) -> (i32, i32) {
    %c0_i32 = arith.constant 0 : i32
    %c0_i32_0 = arith.constant 0 : i32
    %c0_i32_1 = arith.constant 0 : i32
    return %c0_i32, %c0_i32_0 : i32, i32
  }
  func.func @transform_5(%arg0: i32, %arg1: i32) -> (i32, i32) {
    %c0_i32 = arith.constant 0 : i32
    %c0_i32_0 = arith.constant 0 : i32
    return %c0_i32, %arg1 : i32, i32
  }
  func.func @transform_6(%arg0: i32, %arg1: i32) -> (i32, i32) {
    %c0_i32 = arith.constant 0 : i32
    %c0_i32_0 = arith.constant 0 : i32
    return %c0_i32, %arg1 : i32, i32
  }
  func.func @transform_7(%arg0: i32, %arg1: i32) -> (i32, i32) {
    %c0_i32 = arith.constant 0 : i32
    return %arg0, %arg1 : i32, i32
  }
}

</mosaic_0001>

<llo_original>
// kernel: tpu_custom_call.1
$region0: #{tpu_custom_call.1}
  #allocation0 [shape = 'u32[]', space=smem, size = 0x4, offset = 0x4, fixed_abs, tag = 'smem constant byte address 0x4 - core index']
  #allocation1 [shape = 'u32[144,128]{1,0:T(1,128)}', space=vmem, size = 0x12000, scoped, tag = 'internal scratch']
  #allocation2 [shape = 'bf16[16,128]{1,0:T(8,128)(2,1)}', space=vmem, size = 0x1000, scoped, tag = 'scratch operand']
  %s0 = inlined_call_operand.hbm [shape: bf16[16,32], index: 0, kind: input, shape index: {}]
  %s1 = inlined_call_operand.hbm [shape: bf16[32,128], index: 1, kind: input, shape index: {}]
  %s2 = inlined_call_operand.vmem [shape: f32[1,128], index: 2, kind: input, shape index: {}]
  %s3 = inlined_call_operand.hbm [shape: bf16[128,128], index: 3, kind: input, shape index: {}]
  %s4 = inlined_call_operand.vmem [shape: f32[1,128], index: 4, kind: input, shape index: {}]
  %s5 = inlined_call_operand.hbm [shape: bf16[128,128], index: 5, kind: input, shape index: {}]
  %s6 = inlined_call_operand.vmem [shape: f32[1,128], index: 6, kind: input, shape index: {}]
  %s7 = inlined_call_operand.hbm [shape: f32[16,128], index: 7, kind: output, shape index: {}]
  %s8 = sld [smem:[#allocation0]]
  $region58: #{tpu_custom_call.1} parent=0
    _
  %s10 = ssub.s32 1, %s8
  %s11 = scalar_select 0, %s10, %s8
  $region1: #{tpu_custom_call.1} parent=0
    #allocation3 [shape = 'u8[4096]{0}', space=vmem, size = 0x1000, scoped, tag = 'input window, operand 0, single buffered']
    #allocation4 [shape = 's32[1]{0}', space=sflag, size = 0x4, scoped, tag = 'scoped memory for tpu_custom_call.1']
    #allocation5 [shape = 's32[1]{0}', space=sflag, size = 0x4, scoped, tag = 'scoped memory for tpu_custom_call.1']
    #allocation6 [shape = 'u8[8192]{0}', space=vmem, size = 0x2000, scoped, tag = 'input window, operand 1, single buffered']
    #allocation7 [shape = 's32[1]{0}', space=sflag, size = 0x4, scoped, tag = 'scoped memory for tpu_custom_call.1']
    #allocation8 [shape = 'u8[32768]{0}', space=vmem, size = 0x8000, scoped, tag = 'input window, operand 3, single buffered']
    #allocation9 [shape = 'u8[32768]{0}', space=vmem, size = 0x8000, scoped, tag = 'input window, operand 5, single buffered']
    #allocation10 [shape = 's32[1]{0}', space=sflag, size = 0x4, scoped, tag = 'scoped memory for tpu_custom_call.1']
    #allocation11 [shape = 'u8[8192]{0}', space=vmem, size = 0x2000, scoped, tag = 'output window, operand 0, single buffered']
    %12 = vsyncpa [#allocation4], 0
    %13 = vsyncpa [#allocation7], 0
    %14 = vsyncpa [#allocation10], 0
    %15 = vsyncpa [#allocation5], 0
    // Predicated region
    $region2: #{tpu_custom_call.1} parent=1 // pred_check
      _
    $region3: #{tpu_custom_call.1} parent=1 // pred_check_branch
      %17 = sbr.rel (0) target = $region5
    $region4: #{tpu_custom_call.1} parent=1 // pred_region
      %s19 = ssub.s32 128, 128
      %20 = vsyncadd [#allocation4], %s19
      %s21 = sshll.u32 [#allocation3], 4
      %s22 = int_to_ptr.vmem [resolvable:$true] %s21
      %27 = dma.hbm_to_vmem [thread:$0]  %s0, 128, %s22, [#allocation4], 64, 64, 4
    $region5: #{tpu_custom_call.1} parent=1 // pred_fallthru
      _
    // Predicated region
    $region6: #{tpu_custom_call.1} parent=1 // pred_check
      _
    $region7: #{tpu_custom_call.1} parent=1 // pred_check_branch
      %29 = sbr.rel (0) target = $region9
    $region8: #{tpu_custom_call.1} parent=1 // pred_region
      %s31 = ssub.s32 256, 256
      %32 = vsyncadd [#allocation7], %s31
      %s33 = sshll.u32 [#allocation6], 4
      %s34 = int_to_ptr.vmem [resolvable:$true] %s33
      %39 = dma.hbm_to_vmem [thread:$0]  %s1, 256, %s34, [#allocation7], 64, 64, 4
    $region9: #{tpu_custom_call.1} parent=1 // pred_fallthru
      _
    // Predicated region
    $region10: #{tpu_custom_call.1} parent=1 // pred_check
      _
    $region11: #{tpu_custom_call.1} parent=1 // pred_check_branch
      %41 = sbr.rel (0) target = $region13
    $region12: #{tpu_custom_call.1} parent=1 // pred_region
      _
    $region13: #{tpu_custom_call.1} parent=1 // pred_fallthru
      _
    // Predicated region
    $region14: #{tpu_custom_call.1} parent=1 // pred_check
      _
    $region15: #{tpu_custom_call.1} parent=1 // pred_check_branch
      %43 = sbr.rel (0) target = $region17
    $region16: #{tpu_custom_call.1} parent=1 // pred_region
      %s45 = ssub.s32 1024, 1024
      %46 = vsyncadd [#allocation7], %s45
      %s47 = sshll.u32 [#allocation8], 4
      %s48 = int_to_ptr.vmem [resolvable:$true] %s47
      %53 = dma.hbm_to_vmem [thread:$0]  %s3, 1024, %s48, [#allocation7], 64, 64, 4
    $region17: #{tpu_custom_call.1} parent=1 // pred_fallthru
      _
    // Predicated region
    $region18: #{tpu_custom_call.1} parent=1 // pred_check
      _
    $region19: #{tpu_custom_call.1} parent=1 // pred_check_branch
      %55 = sbr.rel (0) target = $region21
    $region20: #{tpu_custom_call.1} parent=1 // pred_region
      _
    $region21: #{tpu_custom_call.1} parent=1 // pred_fallthru
      _
    // Predicated region
    $region22: #{tpu_custom_call.1} parent=1 // pred_check
      _
    $region23: #{tpu_custom_call.1} parent=1 // pred_check_branch
      %57 = sbr.rel (0) target = $region25
    $region24: #{tpu_custom_call.1} parent=1 // pred_region
      %s59 = ssub.s32 1024, 1024
      %60 = vsyncadd [#allocation10], %s59
      %s61 = sshll.u32 [#allocation9], 4
      %s62 = int_to_ptr.vmem [resolvable:$true] %s61
      %67 = dma.hbm_to_vmem [thread:$0]  %s5, 1024, %s62, [#allocation10], 64, 64, 4
    $region25: #{tpu_custom_call.1} parent=1 // pred_fallthru
      _
    // Predicated region
    $region26: #{tpu_custom_call.1} parent=1 // pred_check
      _
    $region27: #{tpu_custom_call.1} parent=1 // pred_check_branch
      %69 = sbr.rel (0) target = $region29
    $region28: #{tpu_custom_call.1} parent=1 // pred_region
      _
    $region29: #{tpu_custom_call.1} parent=1 // pred_fallthru
      _
    // Predicated region
    $region30: #{tpu_custom_call.1} parent=1 // pred_check
      _
    $region31: #{tpu_custom_call.1} parent=1 // pred_check_branch
      %71 = sbr.rel (0) target = $region33
    $region32: #{tpu_custom_call.1} parent=1 // pred_region
      %72 = dma.done [#allocation4], 128
    $region33: #{tpu_custom_call.1} parent=1 // pred_fallthru
      _
    // Predicated region
    $region34: #{tpu_custom_call.1} parent=1 // pred_check
      _
    $region35: #{tpu_custom_call.1} parent=1 // pred_check_branch
      %74 = sbr.rel (0) target = $region37
    $region36: #{tpu_custom_call.1} parent=1 // pred_region
      %75 = dma.done [#allocation7], 256
    $region37: #{tpu_custom_call.1} parent=1 // pred_fallthru
      _
    // Predicated region
    $region38: #{tpu_custom_call.1} parent=1 // pred_check
      _
    $region39: #{tpu_custom_call.1} parent=1 // pred_check_branch
      %77 = sbr.rel (0) target = $region41
    $region40: #{tpu_custom_call.1} parent=1 // pred_region
      %78 = dma.done [#allocation7], 1024
    $region41: #{tpu_custom_call.1} parent=1 // pred_fallthru
      _
    // Predicated region
    $region42: #{tpu_custom_call.1} parent=1 // pred_check
      _
    $region43: #{tpu_custom_call.1} parent=1 // pred_check_branch
      %80 = sbr.rel (0) target = $region45
    $region44: #{tpu_custom_call.1} parent=1 // pred_region
      %81 = dma.done [#allocation10], 1024
    $region45: #{tpu_custom_call.1} parent=1 // pred_fallthru
      _
    %p83 = scmp.eq.s32.totalorder 0, 0
    // Predicated region
    $region46: #{tpu_custom_call.1} parent=1 // pred_check
      %p84 = pneg %p83
    $region47: #{tpu_custom_call.1} parent=1 // pred_check_branch
      %86 = sbr.rel (%p84) target = $region49
    $region48: #{tpu_custom_call.1} parent=1 // pred_region
      %v87 = vld [vmem:[#allocation3] sm:$0xf]
      %v88 = vld [vmem:[#allocation3 + $0x4] sm:$0xf]
      %v89 = vld [vmem:[#allocation6] sm:$0xf]
      %v90 = vld [vmem:[#allocation6 + $0x4] sm:$0xf]
      %v91 = vld [vmem:[#allocation6 + $0x8] sm:$0xf]
      %v92 = vld [vmem:[#allocation6 + $0xc] sm:$0xf]
      %v93 = vld [vmem:[%s2] sm:$0x1]
      %v95 = vlaneseq
      %v96 = vshrl.u32 %v95, 7
      %v97 = vsub.s32 0, %v96
      %v98 = vrot.slane %v93, %v97
      %v102 = vunpack.c.l.b16 %v87
      %v103 = vunpack.c.l.b16 %v88
      %v104 = vpack.c.b16 %v103, %v102
      %v109 = vunpack.c.l.b16 %v89
      %v110 = vunpack.c.l.b16 %v90
      %v111 = vunpack.c.l.b16 %v91
      %v112 = vunpack.c.l.b16 %v92
      %v113 = vpack.c.b16 %v110, %v109
      %v114 = vpack.c.b16 %v112, %v111
      %vm117 = vcmask 261120
      %v119 = vsel %vm117, %v104, 0
      %121 = vmatprep.subr.bf16.mxu0 0
      %122 = vmatpush1.bf16.msra.mxu0 0
      %123 = vmatprep.subr.bf16.mxu0 0
      %124 = vmatpush1.bf16.msra.mxu0 0
      %125 = vmatprep.subr.bf16.mxu0 0
      %126 = vmatpush1.bf16.msra.mxu0 0
      %127 = vmatprep.subr.bf16.mxu0 0
      %128 = vmatpush1.bf16.msra.mxu0 0
      %129 = vmatprep.subr.bf16.mxu0 0
      %130 = vmatpush1.bf16.msra.mxu0 0
      %131 = vmatprep.subr.bf16.mxu0 0
      %132 = vmatpush1.bf16.msra.mxu0 0
      %133 = vmatprep.subr.bf16.mxu0 0
      %134 = vmatpush1.bf16.msra.mxu0 %v114
      %135 = vmatprep.subr.bf16.mxu0 0
      %136 = vmatpush1.bf16.msra.mxu0 %v113
      %137 = vmatprep.subr.bf16.mxu0 0
      %138 = vmatpush2.bf16.msra.mxu0 0
      %139 = vmatprep.subr.bf16.mxu0 0
      %140 = vmatpush2.bf16.msra.mxu0 0
      %141 = vmatprep.subr.bf16.mxu0 0
      %142 = vmatpush2.bf16.msra.mxu0 0
      %143 = vmatprep.subr.bf16.mxu0 0
      %144 = vmatpush2.bf16.msra.mxu0 0
      %145 = vmatprep.subr.bf16.mxu0 0
      %146 = vmatpush2.bf16.msra.mxu0 0
      %147 = vmatprep.subr.bf16.mxu0 0
      %148 = vmatpush2.bf16.msra.mxu0 0
      %149 = vmatprep.subr.bf16.mxu0 0
      %150 = vmatpush2.bf16.msra.mxu0 0
      %151 = vmatprep.subr.bf16.mxu0 0
      %152 = vmatpush2.bf16.msra.mxu0 0
      %153 = vmatprep.mubr.bf16.mxu0 0
      %154 = vmatmul.mubr.bf16.gmra.mxu0 %v119
      %v155 = vpop.f32.mrf.mxu0
      %v156 = vadd.f32 %v98, %v155
      %v157 = vpop.f32.mrf.mxu0
      %v158 = vpop.f32.mrf.mxu0
      %v159 = vadd.f32 %v98, %v158
      %v160 = vpop.f32.mrf.mxu0
      %161 = vdwg.mxu0
      %v162 = vmax.f32 %v156, 0.0
      %v163 = vmax.f32 %v159, 0.0
      %v164 = vpack.c.bf16 %v163, %v162
      %v165 = vld [vmem:[#allocation8] sm:$0xf]
      %v166 = vld [vmem:[#allocation8 + $0x4] sm:$0xf]
      %v167 = vld [vmem:[#allocation8 + $0x8] sm:$0xf]
      %v168 = vld [vmem:[#allocation8 + $0xc] sm:$0xf]
      %v169 = vld [vmem:[#allocation8 + $0x10] sm:$0xf]
      %v170 = vld [vmem:[#allocation8 + $0x14] sm:$0xf]
      %v171 = vld [vmem:[#allocation8 + $0x18] sm:$0xf]
      %v172 = vld [vmem:[#allocation8 + $0x1c] sm:$0xf]
      %v173 = vld [vmem:[#allocation8 + $0x20] sm:$0xf]
      %v174 = vld [vmem:[#allocation8 + $0x24] sm:$0xf]
      %v175 = vld [vmem:[#allocation8 + $0x28] sm:$0xf]
      %v176 = vld [vmem:[#allocation8 + $0x2c] sm:$0xf]
      %v177 = vld [vmem:[#allocation8 + $0x30] sm:$0xf]
      %v178 = vld [vmem:[#allocation8 + $0x34] sm:$0xf]
      %v179 = vld [vmem:[#allocation8 + $0x38] sm:$0xf]
      %v180 = vld [vmem:[#allocation8 + $0x3c] sm:$0xf]
      %v181 = vld [vmem:[%s4] sm:$0x1]
      %v183 = vlaneseq
      %v184 = vshrl.u32 %v183, 7
      %v185 = vsub.s32 0, %v184
      %v186 = vrot.slane %v181, %v185
      %v204 = vunpack.c.l.b16 %v165
      %v205 = vunpack.c.l.b16 %v166
      %v206 = vunpack.c.l.b16 %v167
      %v207 = vunpack.c.l.b16 %v168
      %v208 = vunpack.c.l.b16 %v169
      %v209 = vunpack.c.l.b16 %v170
      %v210 = vunpack.c.l.b16 %v171
      %v211 = vunpack.c.l.b16 %v172
      %v212 = vunpack.c.l.b16 %v173
      %v213 = vunpack.c.l.b16 %v174
      %v214 = vunpack.c.l.b16 %v175
      %v215 = vunpack.c.l.b16 %v176
      %v216 = vunpack.c.l.b16 %v177
      %v217 = vunpack.c.l.b16 %v178
      %v218 = vunpack.c.l.b16 %v179
      %v219 = vunpack.c.l.b16 %v180
      %v220 = vpack.c.b16 %v205, %v204
      %v221 = vpack.c.b16 %v207, %v206
      %v222 = vpack.c.b16 %v209, %v208
      %v223 = vpack.c.b16 %v211, %v210
      %v224 = vpack.c.b16 %v213, %v212
      %v225 = vpack.c.b16 %v215, %v214
      %v226 = vpack.c.b16 %v217, %v216
      %v227 = vpack.c.b16 %v219, %v218
      %236 = vmatprep.subr.bf16.mxu0 0
      %237 = vmatpush1.bf16.msra.mxu0 %v227
      %238 = vmatprep.subr.bf16.mxu0 0
      %239 = vmatpush1.bf16.msra.mxu0 %v226
      %240 = vmatprep.subr.bf16.mxu0 0
      %241 = vmatpush1.bf16.msra.mxu0 %v225
      %242 = vmatprep.subr.bf16.mxu0 0
      %243 = vmatpush1.bf16.msra.mxu0 %v224
      %244 = vmatprep.subr.bf16.mxu0 0
      %245 = vmatpush1.bf16.msra.mxu0 %v223
      %246 = vmatprep.subr.bf16.mxu0 0
      %247 = vmatpush1.bf16.msra.mxu0 %v222
      %248 = vmatprep.subr.bf16.mxu0 0
      %249 = vmatpush1.bf16.msra.mxu0 %v221
      %250 = vmatprep.subr.bf16.mxu0 0
      %251 = vmatpush1.bf16.msra.mxu0 %v220
      %252 = vmatprep.subr.bf16.mxu0 0
      %253 = vmatpush2.bf16.msra.mxu0 0
      %254 = vmatprep.subr.bf16.mxu0 0
      %255 = vmatpush2.bf16.msra.mxu0 0
      %256 = vmatprep.subr.bf16.mxu0 0
      %257 = vmatpush2.bf16.msra.mxu0 0
      %258 = vmatprep.subr.bf16.mxu0 0
      %259 = vmatpush2.bf16.msra.mxu0 0
      %260 = vmatprep.subr.bf16.mxu0 0
      %261 = vmatpush2.bf16.msra.mxu0 0
      %262 = vmatprep.subr.bf16.mxu0 0
      %263 = vmatpush2.bf16.msra.mxu0 0
      %264 = vmatprep.subr.bf16.mxu0 0
      %265 = vmatpush2.bf16.msra.mxu0 0
      %266 = vmatprep.subr.bf16.mxu0 0
      %267 = vmatpush2.bf16.msra.mxu0 0
      %268 = vmatprep.mubr.bf16.mxu0 0
      %269 = vmatmul.mubr.bf16.gmra.mxu0 %v164
      %v270 = vpop.f32.mrf.mxu0
      %v271 = vadd.f32 %v186, %v270
      %v272 = vpop.f32.mrf.mxu0
      %v273 = vpop.f32.mrf.mxu0
      %v274 = vadd.f32 %v186, %v273
      %v275 = vpop.f32.mrf.mxu0
      %276 = vdwg.mxu0
      %v277 = vmax.f32 %v271, 0.0
      %v278 = vmax.f32 %v274, 0.0
      %v279 = vpack.c.bf16 %v278, %v277
      %v281 = vunpack.c.l.b16 %v279
      %v282 = vunpack.c.h.b16 %v279
      %v283 = vpack.c.b16 %v281, %v281
      %v284 = vpack.c.b16 %v282, %v282
      %287 = vst [vmem:[#allocation2] sm:$0xf] %v283
      %288 = vst [vmem:[#allocation2 + $0x4] sm:$0xf] %v284
    $region49: #{tpu_custom_call.1} parent=1 // pred_fallthru
      _
    %v289 = vld [vmem:[#allocation2] sm:$0xf]
    %v290 = vld [vmem:[#allocation2 + $0x4] sm:$0xf]
    %v291 = vld [vmem:[#allocation9] sm:$0xf]
    %v292 = vld [vmem:[#allocation9 + $0x4] sm:$0xf]
    %v293 = vld [vmem:[#allocation9 + $0x8] sm:$0xf]
    %v294 = vld [vmem:[#allocation9 + $0xc] sm:$0xf]
    %v295 = vld [vmem:[#allocation9 + $0x10] sm:$0xf]
    %v296 = vld [vmem:[#allocation9 + $0x14] sm:$0xf]
    %v297 = vld [vmem:[#allocation9 + $0x18] sm:$0xf]
    %v298 = vld [vmem:[#allocation9 + $0x1c] sm:$0xf]
    %v299 = vld [vmem:[#allocation9 + $0x20] sm:$0xf]
    %v300 = vld [vmem:[#allocation9 + $0x24] sm:$0xf]
    %v301 = vld [vmem:[#allocation9 + $0x28] sm:$0xf]
    %v302 = vld [vmem:[#allocation9 + $0x2c] sm:$0xf]
    %v303 = vld [vmem:[#allocation9 + $0x30] sm:$0xf]
    %v304 = vld [vmem:[#allocation9 + $0x34] sm:$0xf]
    %v305 = vld [vmem:[#allocation9 + $0x38] sm:$0xf]
    %v306 = vld [vmem:[#allocation9 + $0x3c] sm:$0xf]
    %v307 = vld [vmem:[%s6] sm:$0x1]
    %v309 = vlaneseq
    %v310 = vshrl.u32 %v309, 7
    %v311 = vsub.s32 0, %v310
    %v312 = vrot.slane %v307, %v311
    %v316 = vunpack.c.l.b16 %v289
    %v317 = vunpack.c.l.b16 %v290
    %v318 = vpack.c.b16 %v317, %v316
    %v336 = vunpack.c.l.b16 %v291
    %v337 = vunpack.c.l.b16 %v292
    %v338 = vunpack.c.l.b16 %v293
    %v339 = vunpack.c.l.b16 %v294
    %v340 = vunpack.c.l.b16 %v295
    %v341 = vunpack.c.l.b16 %v296
    %v342 = vunpack.c.l.b16 %v297
    %v343 = vunpack.c.l.b16 %v298
    %v344 = vunpack.c.l.b16 %v299
    %v345 = vunpack.c.l.b16 %v300
    %v346 = vunpack.c.l.b16 %v301
    %v347 = vunpack.c.l.b16 %v302
    %v348 = vunpack.c.l.b16 %v303
    %v349 = vunpack.c.l.b16 %v304
    %v350 = vunpack.c.l.b16 %v305
    %v351 = vunpack.c.l.b16 %v306
    %v352 = vpack.c.b16 %v337, %v336
    %v353 = vpack.c.b16 %v339, %v338
    %v354 = vpack.c.b16 %v341, %v340
    %v355 = vpack.c.b16 %v343, %v342
    %v356 = vpack.c.b16 %v345, %v344
    %v357 = vpack.c.b16 %v347, %v346
    %v358 = vpack.c.b16 %v349, %v348
    %v359 = vpack.c.b16 %v351, %v350
    %368 = vmatprep.subr.bf16.mxu0 0
    %369 = vmatpush1.bf16.msra.mxu0 %v359
    %370 = vmatprep.subr.bf16.mxu0 0
    %371 = vmatpush1.bf16.msra.mxu0 %v358
    %372 = vmatprep.subr.bf16.mxu0 0
    %373 = vmatpush1.bf16.msra.mxu0 %v357
    %374 = vmatprep.subr.bf16.mxu0 0
    %375 = vmatpush1.bf16.msra.mxu0 %v356
    %376 = vmatprep.subr.bf16.mxu0 0
    %377 = vmatpush1.bf16.msra.mxu0 %v355
    %378 = vmatprep.subr.bf16.mxu0 0
    %379 = vmatpush1.bf16.msra.mxu0 %v354
    %380 = vmatprep.subr.bf16.mxu0 0
    %381 = vmatpush1.bf16.msra.mxu0 %v353
    %382 = vmatprep.subr.bf16.mxu0 0
    %383 = vmatpush1.bf16.msra.mxu0 %v352
    %384 = vmatprep.subr.bf16.mxu0 0
    %385 = vmatpush2.bf16.msra.mxu0 0
    %386 = vmatprep.subr.bf16.mxu0 0
    %387 = vmatpush2.bf16.msra.mxu0 0
    %388 = vmatprep.subr.bf16.mxu0 0
    %389 = vmatpush2.bf16.msra.mxu0 0
    %390 = vmatprep.subr.bf16.mxu0 0
    %391 = vmatpush2.bf16.msra.mxu0 0
    %392 = vmatprep.subr.bf16.mxu0 0
    %393 = vmatpush2.bf16.msra.mxu0 0
    %394 = vmatprep.subr.bf16.mxu0 0
    %395 = vmatpush2.bf16.msra.mxu0 0
    %396 = vmatprep.subr.bf16.mxu0 0
    %397 = vmatpush2.bf16.msra.mxu0 0
    %398 = vmatprep.subr.bf16.mxu0 0
    %399 = vmatpush2.bf16.msra.mxu0 0
    %400 = vmatprep.mubr.bf16.mxu0 0
    %401 = vmatmul.mubr.bf16.gmra.mxu0 %v318
    %v402 = vpop.f32.mrf.mxu0
    %v403 = vadd.f32 %v312, %v402
    %v404 = vpop.f32.mrf.mxu0
    %v405 = vpop.f32.mrf.mxu0
    %v406 = vadd.f32 %v312, %v405
    %v407 = vpop.f32.mrf.mxu0
    %408 = vdwg.mxu0
    %409 = vst [vmem:[#allocation11] sm:$0xff] %v403
    %410 = vst [vmem:[#allocation11 + $0x8] sm:$0xff] %v406
    // Predicated region
    $region50: #{tpu_custom_call.1} parent=1 // pred_check
      _
    $region51: #{tpu_custom_call.1} parent=1 // pred_check_branch
      %412 = sbr.rel (0) target = $region53
    $region52: #{tpu_custom_call.1} parent=1 // pred_region
      %s414 = ssub.s32 256, 256
      %415 = vsyncadd [#allocation5], %s414
      %s416 = sshll.u32 [#allocation11], 4
      %s417 = int_to_ptr.vmem [resolvable:$true] %s416
      %422 = dma.vmem_to_hbm [thread:$0]  %s417, 256, %s7, [#allocation5], 128, 128, 8
    $region53: #{tpu_custom_call.1} parent=1 // pred_fallthru
      _
    // Predicated region
    $region54: #{tpu_custom_call.1} parent=1 // pred_check
      _
    $region55: #{tpu_custom_call.1} parent=1 // pred_check_branch
      %424 = sbr.rel (0) target = $region57
    $region56: #{tpu_custom_call.1} parent=1 // pred_region
      %425 = dma.done [#allocation5], 256
    $region57: #{tpu_custom_call.1} parent=1 // pred_fallthru
      _
    %426 = vsyncpa [#allocation4], 1
    %427 = vsyncpa [#allocation7], 1
    %428 = vsyncpa [#allocation10], 1
    %429 = vsyncpa [#allocation5], 1

// kernel: tpu_custom_call.1
$region0: #{tpu_custom_call.1}
  #allocation0 [shape = 'u32[]', space=smem, size = 0x4, offset = 0x4, fixed_abs, tag = 'smem constant byte address 0x4 - core index']
  #allocation1 [shape = 'u32[144,128]{1,0:T(1,128)}', space=vmem, size = 0x12000, scoped, tag = 'internal scratch']
  #allocation2 [shape = 'bf16[16,128]{1,0:T(8,128)(2,1)}', space=vmem, size = 0x1000, scoped, tag = 'scratch operand']
  %s0 = inlined_call_operand.hbm [shape: bf16[16,32], index: 0, kind: input, shape index: {}]
  %s1 = inlined_call_operand.hbm [shape: bf16[32,128], index: 1, kind: input, shape index: {}]
  %s2 = inlined_call_operand.vmem [shape: f32[1,128], index: 2, kind: input, shape index: {}]
  %s3 = inlined_call_operand.hbm [shape: bf16[128,128], index: 3, kind: input, shape index: {}]
  %s4 = inlined_call_operand.vmem [shape: f32[1,128], index: 4, kind: input, shape index: {}]
  %s5 = inlined_call_operand.hbm [shape: bf16[128,128], index: 5, kind: input, shape index: {}]
  %s6 = inlined_call_operand.vmem [shape: f32[1,128], index: 6, kind: input, shape index: {}]
  %s7 = inlined_call_operand.hbm [shape: f32[16,128], index: 7, kind: output, shape index: {}]
  %s8 = sld [smem:[#allocation0]]
  $region58: #{tpu_custom_call.1} parent=0
    _
  %s10 = ssub.s32 1, %s8
  %s11 = scalar_select 0, %s10, %s8
  $region1: #{tpu_custom_call.1} parent=0
    #allocation3 [shape = 'u8[4096]{0}', space=vmem, size = 0x1000, scoped, tag = 'input window, operand 0, single buffered']
    #allocation4 [shape = 's32[1]{0}', space=sflag, size = 0x4, scoped, tag = 'scoped memory for tpu_custom_call.1']
    #allocation5 [shape = 's32[1]{0}', space=sflag, size = 0x4, scoped, tag = 'scoped memory for tpu_custom_call.1']
    #allocation6 [shape = 'u8[8192]{0}', space=vmem, size = 0x2000, scoped, tag = 'input window, operand 1, single buffered']
    #allocation7 [shape = 's32[1]{0}', space=sflag, size = 0x4, scoped, tag = 'scoped memory for tpu_custom_call.1']
    #allocation8 [shape = 'u8[32768]{0}', space=vmem, size = 0x8000, scoped, tag = 'input window, operand 3, single buffered']
    #allocation9 [shape = 'u8[32768]{0}', space=vmem, size = 0x8000, scoped, tag = 'input window, operand 5, single buffered']
    #allocation10 [shape = 's32[1]{0}', space=sflag, size = 0x4, scoped, tag = 'scoped memory for tpu_custom_call.1']
    #allocation11 [shape = 'u8[8192]{0}', space=vmem, size = 0x2000, scoped, tag = 'output window, operand 0, single buffered']
    %12 = vsyncpa [#allocation4], 0
    %13 = vsyncpa [#allocation7], 0
    %14 = vsyncpa [#allocation10], 0
    %15 = vsyncpa [#allocation5], 0
    // Predicated region
    $region2: #{tpu_custom_call.1} parent=1 // pred_check
      _
    $region3: #{tpu_custom_call.1} parent=1 // pred_check_branch
      %17 = sbr.rel (0) target = $region5
    $region4: #{tpu_custom_call.1} parent=1 // pred_region
      %s19 = ssub.s32 128, 128
      %20 = vsyncadd [#allocation4], %s19
      %s21 = sshll.u32 [#allocation3], 4
      %s22 = int_to_ptr.vmem [resolvable:$true] %s21
      %27 = dma.hbm_to_vmem [thread:$0]  %s0, 128, %s22, [#allocation4], 64, 64, 4
    $region5: #{tpu_custom_call.1} parent=1 // pred_fallthru
      _
    // Predicated region
    $region6: #{tpu_custom_call.1} parent=1 // pred_check
      _
    $region7: #{tpu_custom_call.1} parent=1 // pred_check_branch
      %29 = sbr.rel (0) target = $region9
    $region8: #{tpu_custom_call.1} parent=1 // pred_region
      %s31 = ssub.s32 256, 256
      %32 = vsyncadd [#allocation7], %s31
      %s33 = sshll.u32 [#allocation6], 4
      %s34 = int_to_ptr.vmem [resolvable:$true] %s33
      %39 = dma.hbm_to_vmem [thread:$0]  %s1, 256, %s34, [#allocation7], 64, 64, 4
    $region9: #{tpu_custom_call.1} parent=1 // pred_fallthru
      _
    // Predicated region
    $region10: #{tpu_custom_call.1} parent=1 // pred_check
      _
    $region11: #{tpu_custom_call.1} parent=1 // pred_check_branch
      %41 = sbr.rel (0) target = $region13
    $region12: #{tpu_custom_call.1} parent=1 // pred_region
      _
    $region13: #{tpu_custom_call.1} parent=1 // pred_fallthru
      _
    // Predicated region
    $region14: #{tpu_custom_call.1} parent=1 // pred_check
      _
    $region15: #{tpu_custom_call.1} parent=1 // pred_check_branch
      %43 = sbr.rel (0) target = $region17
    $region16: #{tpu_custom_call.1} parent=1 // pred_region
      %s45 = ssub.s32 1024, 1024
      %46 = vsyncadd [#allocation7], %s45
      %s47 = sshll.u32 [#allocation8], 4
      %s48 = int_to_ptr.vmem [resolvable:$true] %s47
      %53 = dma.hbm_to_vmem [thread:$0]  %s3, 1024, %s48, [#allocation7], 64, 64, 4
    $region17: #{tpu_custom_call.1} parent=1 // pred_fallthru
      _
    // Predicated region
    $region18: #{tpu_custom_call.1} parent=1 // pred_check
      _
    $region19: #{tpu_custom_call.1} parent=1 // pred_check_branch
      %55 = sbr.rel (0) target = $region21
    $region20: #{tpu_custom_call.1} parent=1 // pred_region
      _
    $region21: #{tpu_custom_call.1} parent=1 // pred_fallthru
      _
    // Predicated region
    $region22: #{tpu_custom_call.1} parent=1 // pred_check
      _
    $region23: #{tpu_custom_call.1} parent=1 // pred_check_branch
      %57 = sbr.rel (0) target = $region25
    $region24: #{tpu_custom_call.1} parent=1 // pred_region
      %s59 = ssub.s32 1024, 1024
      %60 = vsyncadd [#allocation10], %s59
      %s61 = sshll.u32 [#allocation9], 4
      %s62 = int_to_ptr.vmem [resolvable:$true] %s61
      %67 = dma.hbm_to_vmem [thread:$0]  %s5, 1024, %s62, [#allocation10], 64, 64, 4
    $region25: #{tpu_custom_call.1} parent=1 // pred_fallthru
      _
    // Predicated region
    $region26: #{tpu_custom_call.1} parent=1 // pred_check
      _
    $region27: #{tpu_custom_call.1} parent=1 // pred_check_branch
      %69 = sbr.rel (0) target = $region29
    $region28: #{tpu_custom_call.1} parent=1 // pred_region
      _
    $region29: #{tpu_custom_call.1} parent=1 // pred_fallthru
      _
    // Predicated region
    $region30: #{tpu_custom_call.1} parent=1 // pred_check
      _
    $region31: #{tpu_custom_call.1} parent=1 // pred_check_branch
      %71 = sbr.rel (0) target = $region33
    $region32: #{tpu_custom_call.1} parent=1 // pred_region
      %72 = dma.done [#allocation4], 128
    $region33: #{tpu_custom_call.1} parent=1 // pred_fallthru
      _
    // Predicated region
    $region34: #{tpu_custom_call.1} parent=1 // pred_check
      _
    $region35: #{tpu_custom_call.1} parent=1 // pred_check_branch
      %74 = sbr.rel (0) target = $region37
    $region36: #{tpu_custom_call.1} parent=1 // pred_region
      %75 = dma.done [#allocation7], 256
    $region37: #{tpu_custom_call.1} parent=1 // pred_fallthru
      _
    // Predicated region
    $region38: #{tpu_custom_call.1} parent=1 // pred_check
      _
    $region39: #{tpu_custom_call.1} parent=1 // pred_check_branch
      %77 = sbr.rel (0) target = $region41
    $region40: #{tpu_custom_call.1} parent=1 // pred_region
      %78 = dma.done [#allocation7], 1024
    $region41: #{tpu_custom_call.1} parent=1 // pred_fallthru
      _
    // Predicated region
    $region42: #{tpu_custom_call.1} parent=1 // pred_check
      _
    $region43: #{tpu_custom_call.1} parent=1 // pred_check_branch
      %80 = sbr.rel (0) target = $region45
    $region44: #{tpu_custom_call.1} parent=1 // pred_region
      %81 = dma.done [#allocation10], 1024
    $region45: #{tpu_custom_call.1} parent=1 // pred_fallthru
      _
    %p83 = scmp.eq.s32.totalorder 0, 0
    // Predicated region
    $region46: #{tpu_custom_call.1} parent=1 // pred_check
      %p84 = pneg %p83
    $region47: #{tpu_custom_call.1} parent=1 // pred_check_branch
      %86 = sbr.rel (%p84) target = $region49
    $region48: #{tpu_custom_call.1} parent=1 // pred_region
      %v87 = vld [vmem:[#allocation3] sm:$0xf]
      %v88 = vld [vmem:[#allocation3 + $0x4] sm:$0xf]
      %v89 = vld [vmem:[#allocation6] sm:$0xf]
      %v90 = vld [vmem:[#allocation6 + $0x4] sm:$0xf]
      %v91 = vld [vmem:[#allocation6 + $0x8] sm:$0xf]
      %v92 = vld [vmem:[#allocation6 + $0xc] sm:$0xf]
      %v93 = vld [vmem:[%s2] sm:$0x1]
      %v95 = vlaneseq
      %v96 = vshrl.u32 %v95, 7
      %v97 = vsub.s32 0, %v96
      %v98 = vrot.slane %v93, %v97
      %v102 = vunpack.c.l.b16 %v87
      %v103 = vunpack.c.l.b16 %v88
      %v104 = vpack.c.b16 %v103, %v102
      %v109 = vunpack.c.l.b16 %v89
      %v110 = vunpack.c.l.b16 %v90
      %v111 = vunpack.c.l.b16 %v91
      %v112 = vunpack.c.l.b16 %v92
      %v113 = vpack.c.b16 %v110, %v109
      %v114 = vpack.c.b16 %v112, %v111
      %vm117 = vcmask 261120
      %v119 = vsel %vm117, %v104, 0
      %121 = vmatprep.subr.bf16.mxu0 0
      %122 = vmatpush1.bf16.msra.mxu0 0
      %123 = vmatprep.subr.bf16.mxu0 0
      %124 = vmatpush1.bf16.msra.mxu0 0
      %125 = vmatprep.subr.bf16.mxu0 0
      %126 = vmatpush1.bf16.msra.mxu0 0
      %127 = vmatprep.subr.bf16.mxu0 0
      %128 = vmatpush1.bf16.msra.mxu0 0
      %129 = vmatprep.subr.bf16.mxu0 0
      %130 = vmatpush1.bf16.msra.mxu0 0
      %131 = vmatprep.subr.bf16.mxu0 0
      %132 = vmatpush1.bf16.msra.mxu0 0
      %133 = vmatprep.subr.bf16.mxu0 0
      %134 = vmatpush1.bf16.msra.mxu0 %v114
      %135 = vmatprep.subr.bf16.mxu0 0
      %136 = vmatpush1.bf16.msra.mxu0 %v113
      %137 = vmatprep.subr.bf16.mxu0 0
      %138 = vmatpush2.bf16.msra.mxu0 0
      %139 = vmatprep.subr.bf16.mxu0 0
      %140 = vmatpush2.bf16.msra.mxu0 0
      %141 = vmatprep.subr.bf16.mxu0 0
      %142 = vmatpush2.bf16.msra.mxu0 0
      %143 = vmatprep.subr.bf16.mxu0 0
      %144 = vmatpush2.bf16.msra.mxu0 0
      %145 = vmatprep.subr.bf16.mxu0 0
      %146 = vmatpush2.bf16.msra.mxu0 0
      %147 = vmatprep.subr.bf16.mxu0 0
      %148 = vmatpush2.bf16.msra.mxu0 0
      %149 = vmatprep.subr.bf16.mxu0 0
      %150 = vmatpush2.bf16.msra.mxu0 0
      %151 = vmatprep.subr.bf16.mxu0 0
      %152 = vmatpush2.bf16.msra.mxu0 0
      %153 = vmatprep.mubr.bf16.mxu0 0
      %154 = vmatmul.mubr.bf16.gmra.mxu0 %v119
      %v155 = vpop.f32.mrf.mxu0
      %v156 = vadd.f32 %v98, %v155
      %v157 = vpop.f32.mrf.mxu0
      %v158 = vpop.f32.mrf.mxu0
      %v159 = vadd.f32 %v98, %v158
      %v160 = vpop.f32.mrf.mxu0
      %161 = vdwg.mxu0
      %v162 = vmax.f32 %v156, 0.0
      %v163 = vmax.f32 %v159, 0.0
      %v164 = vpack.c.bf16 %v163, %v162
      %v165 = vld [vmem:[#allocation8] sm:$0xf]
      %v166 = vld [vmem:[#allocation8 + $0x4] sm:$0xf]
      %v167 = vld [vmem:[#allocation8 + $0x8] sm:$0xf]
      %v168 = vld [vmem:[#allocation8 + $0xc] sm:$0xf]
      %v169 = vld [vmem:[#allocation8 + $0x10] sm:$0xf]
      %v170 = vld [vmem:[#allocation8 + $0x14] sm:$0xf]
      %v171 = vld [vmem:[#allocation8 + $0x18] sm:$0xf]
      %v172 = vld [vmem:[#allocation8 + $0x1c] sm:$0xf]
      %v173 = vld [vmem:[#allocation8 + $0x20] sm:$0xf]
      %v174 = vld [vmem:[#allocation8 + $0x24] sm:$0xf]
      %v175 = vld [vmem:[#allocation8 + $0x28] sm:$0xf]
      %v176 = vld [vmem:[#allocation8 + $0x2c] sm:$0xf]
      %v177 = vld [vmem:[#allocation8 + $0x30] sm:$0xf]
      %v178 = vld [vmem:[#allocation8 + $0x34] sm:$0xf]
      %v179 = vld [vmem:[#allocation8 + $0x38] sm:$0xf]
      %v180 = vld [vmem:[#allocation8 + $0x3c] sm:$0xf]
      %v181 = vld [vmem:[%s4] sm:$0x1]
      %v183 = vlaneseq
      %v184 = vshrl.u32 %v183, 7
      %v185 = vsub.s32 0, %v184
      %v186 = vrot.slane %v181, %v185
      %v204 = vunpack.c.l.b16 %v165
      %v205 = vunpack.c.l.b16 %v166
      %v206 = vunpack.c.l.b16 %v167
      %v207 = vunpack.c.l.b16 %v168
      %v208 = vunpack.c.l.b16 %v169
      %v209 = vunpack.c.l.b16 %v170
      %v210 = vunpack.c.l.b16 %v171
      %v211 = vunpack.c.l.b16 %v172
      %v212 = vunpack.c.l.b16 %v173
      %v213 = vunpack.c.l.b16 %v174
      %v214 = vunpack.c.l.b16 %v175
      %v215 = vunpack.c.l.b16 %v176
      %v216 = vunpack.c.l.b16 %v177
      %v217 = vunpack.c.l.b16 %v178
      %v218 = vunpack.c.l.b16 %v179
      %v219 = vunpack.c.l.b16 %v180
      %v220 = vpack.c.b16 %v205, %v204
      %v221 = vpack.c.b16 %v207, %v206
      %v222 = vpack.c.b16 %v209, %v208
      %v223 = vpack.c.b16 %v211, %v210
      %v224 = vpack.c.b16 %v213, %v212
      %v225 = vpack.c.b16 %v215, %v214
      %v226 = vpack.c.b16 %v217, %v216
      %v227 = vpack.c.b16 %v219, %v218
      %236 = vmatprep.subr.bf16.mxu0 0
      %237 = vmatpush1.bf16.msra.mxu0 %v227
      %238 = vmatprep.subr.bf16.mxu0 0
      %239 = vmatpush1.bf16.msra.mxu0 %v226
      %240 = vmatprep.subr.bf16.mxu0 0
      %241 = vmatpush1.bf16.msra.mxu0 %v225
      %242 = vmatprep.subr.bf16.mxu0 0
      %243 = vmatpush1.bf16.msra.mxu0 %v224
      %244 = vmatprep.subr.bf16.mxu0 0
      %245 = vmatpush1.bf16.msra.mxu0 %v223
      %246 = vmatprep.subr.bf16.mxu0 0
      %247 = vmatpush1.bf16.msra.mxu0 %v222
      %248 = vmatprep.subr.bf16.mxu0 0
      %249 = vmatpush1.bf16.msra.mxu0 %v221
      %250 = vmatprep.subr.bf16.mxu0 0
      %251 = vmatpush1.bf16.msra.mxu0 %v220
      %252 = vmatprep.subr.bf16.mxu0 0
      %253 = vmatpush2.bf16.msra.mxu0 0
      %254 = vmatprep.subr.bf16.mxu0 0
      %255 = vmatpush2.bf16.msra.mxu0 0
      %256 = vmatprep.subr.bf16.mxu0 0
      %257 = vmatpush2.bf16.msra.mxu0 0
      %258 = vmatprep.subr.bf16.mxu0 0
      %259 = vmatpush2.bf16.msra.mxu0 0
      %260 = vmatprep.subr.bf16.mxu0 0
      %261 = vmatpush2.bf16.msra.mxu0 0
      %262 = vmatprep.subr.bf16.mxu0 0
      %263 = vmatpush2.bf16.msra.mxu0 0
      %264 = vmatprep.subr.bf16.mxu0 0
      %265 = vmatpush2.bf16.msra.mxu0 0
      %266 = vmatprep.subr.bf16.mxu0 0
      %267 = vmatpush2.bf16.msra.mxu0 0
      %268 = vmatprep.mubr.bf16.mxu0 0
      %269 = vmatmul.mubr.bf16.gmra.mxu0 %v164
      %v270 = vpop.f32.mrf.mxu0
      %v271 = vadd.f32 %v186, %v270
      %v272 = vpop.f32.mrf.mxu0
      %v273 = vpop.f32.mrf.mxu0
      %v274 = vadd.f32 %v186, %v273
      %v275 = vpop.f32.mrf.mxu0
      %276 = vdwg.mxu0
      %v277 = vmax.f32 %v271, 0.0
      %v278 = vmax.f32 %v274, 0.0
      %v279 = vpack.c.bf16 %v278, %v277
      %v281 = vunpack.c.l.b16 %v279
      %v282 = vunpack.c.h.b16 %v279
      %v283 = vpack.c.b16 %v281, %v281
      %v284 = vpack.c.b16 %v282, %v282
      %287 = vst [vmem:[#allocation2] sm:$0xf] %v283
      %288 = vst [vmem:[#allocation2 + $0x4] sm:$0xf] %v284
    $region49: #{tpu_custom_call.1} parent=1 // pred_fallthru
      _
    %v289 = vld [vmem:[#allocation2] sm:$0xf]
    %v290 = vld [vmem:[#allocation2 + $0x4] sm:$0xf]
    %v291 = vld [vmem:[#allocation9] sm:$0xf]
    %v292 = vld [vmem:[#allocation9 + $0x4] sm:$0xf]
    %v293 = vld [vmem:[#allocation9 + $0x8] sm:$0xf]
    %v294 = vld [vmem:[#allocation9 + $0xc] sm:$0xf]
    %v295 = vld [vmem:[#allocation9 + $0x10] sm:$0xf]
    %v296 = vld [vmem:[#allocation9 + $0x14] sm:$0xf]
    %v297 = vld [vmem:[#allocation9 + $0x18] sm:$0xf]
    %v298 = vld [vmem:[#allocation9 + $0x1c] sm:$0xf]
    %v299 = vld [vmem:[#allocation9 + $0x20] sm:$0xf]
    %v300 = vld [vmem:[#allocation9 + $0x24] sm:$0xf]
    %v301 = vld [vmem:[#allocation9 + $0x28] sm:$0xf]
    %v302 = vld [vmem:[#allocation9 + $0x2c] sm:$0xf]
    %v303 = vld [vmem:[#allocation9 + $0x30] sm:$0xf]
    %v304 = vld [vmem:[#allocation9 + $0x34] sm:$0xf]
    %v305 = vld [vmem:[#allocation9 + $0x38] sm:$0xf]
    %v306 = vld [vmem:[#allocation9 + $0x3c] sm:$0xf]
    %v307 = vld [vmem:[%s6] sm:$0x1]
    %v309 = vlaneseq
    %v310 = vshrl.u32 %v309, 7
    %v311 = vsub.s32 0, %v310
    %v312 = vrot.slane %v307, %v311
    %v316 = vunpack.c.l.b16 %v289
    %v317 = vunpack.c.l.b16 %v290
    %v318 = vpack.c.b16 %v317, %v316
    %v336 = vunpack.c.l.b16 %v291
    %v337 = vunpack.c.l.b16 %v292
    %v338 = vunpack.c.l.b16 %v293
    %v339 = vunpack.c.l.b16 %v294
    %v340 = vunpack.c.l.b16 %v295
    %v341 = vunpack.c.l.b16 %v296
    %v342 = vunpack.c.l.b16 %v297
    %v343 = vunpack.c.l.b16 %v298
    %v344 = vunpack.c.l.b16 %v299
    %v345 = vunpack.c.l.b16 %v300
    %v346 = vunpack.c.l.b16 %v301
    %v347 = vunpack.c.l.b16 %v302
    %v348 = vunpack.c.l.b16 %v303
    %v349 = vunpack.c.l.b16 %v304
    %v350 = vunpack.c.l.b16 %v305
    %v351 = vunpack.c.l.b16 %v306
    %v352 = vpack.c.b16 %v337, %v336
    %v353 = vpack.c.b16 %v339, %v338
    %v354 = vpack.c.b16 %v341, %v340
    %v355 = vpack.c.b16 %v343, %v342
    %v356 = vpack.c.b16 %v345, %v344
    %v357 = vpack.c.b16 %v347, %v346
    %v358 = vpack.c.b16 %v349, %v348
    %v359 = vpack.c.b16 %v351, %v350
    %368 = vmatprep.subr.bf16.mxu0 0
    %369 = vmatpush1.bf16.msra.mxu0 %v359
    %370 = vmatprep.subr.bf16.mxu0 0
    %371 = vmatpush1.bf16.msra.mxu0 %v358
    %372 = vmatprep.subr.bf16.mxu0 0
    %373 = vmatpush1.bf16.msra.mxu0 %v357
    %374 = vmatprep.subr.bf16.mxu0 0
    %375 = vmatpush1.bf16.msra.mxu0 %v356
    %376 = vmatprep.subr.bf16.mxu0 0
    %377 = vmatpush1.bf16.msra.mxu0 %v355
    %378 = vmatprep.subr.bf16.mxu0 0
    %379 = vmatpush1.bf16.msra.mxu0 %v354
    %380 = vmatprep.subr.bf16.mxu0 0
    %381 = vmatpush1.bf16.msra.mxu0 %v353
    %382 = vmatprep.subr.bf16.mxu0 0
    %383 = vmatpush1.bf16.msra.mxu0 %v352
    %384 = vmatprep.subr.bf16.mxu0 0
    %385 = vmatpush2.bf16.msra.mxu0 0
    %386 = vmatprep.subr.bf16.mxu0 0
    %387 = vmatpush2.bf16.msra.mxu0 0
    %388 = vmatprep.subr.bf16.mxu0 0
    %389 = vmatpush2.bf16.msra.mxu0 0
    %390 = vmatprep.subr.bf16.mxu0 0
    %391 = vmatpush2.bf16.msra.mxu0 0
    %392 = vmatprep.subr.bf16.mxu0 0
    %393 = vmatpush2.bf16.msra.mxu0 0
    %394 = vmatprep.subr.bf16.mxu0 0
    %395 = vmatpush2.bf16.msra.mxu0 0
    %396 = vmatprep.subr.bf16.mxu0 0
    %397 = vmatpush2.bf16.msra.mxu0 0
    %398 = vmatprep.subr.bf16.mxu0 0
    %399 = vmatpush2.bf16.msra.mxu0 0
    %400 = vmatprep.mubr.bf16.mxu0 0
    %401 = vmatmul.mubr.bf16.gmra.mxu0 %v318
    %v402 = vpop.f32.mrf.mxu0
    %v403 = vadd.f32 %v312, %v402
    %v404 = vpop.f32.mrf.mxu0
    %v405 = vpop.f32.mrf.mxu0
    %v406 = vadd.f32 %v312, %v405
    %v407 = vpop.f32.mrf.mxu0
    %408 = vdwg.mxu0
    %409 = vst [vmem:[#allocation11] sm:$0xff] %v403
    %410 = vst [vmem:[#allocation11 + $0x8] sm:$0xff] %v406
    // Predicated region
    $region50: #{tpu_custom_call.1} parent=1 // pred_check
      _
    $region51: #{tpu_custom_call.1} parent=1 // pred_check_branch
      %412 = sbr.rel (0) target = $region53
    $region52: #{tpu_custom_call.1} parent=1 // pred_region
      %s414 = ssub.s32 256, 256
      %415 = vsyncadd [#allocation5], %s414
      %s416 = sshll.u32 [#allocation11], 4
      %s417 = int_to_ptr.vmem [resolvable:$true] %s416
      %422 = dma.vmem_to_hbm [thread:$0]  %s417, 256, %s7, [#allocation5], 128, 128, 8
    $region53: #{tpu_custom_call.1} parent=1 // pred_fallthru
      _
    // Predicated region
    $region54: #{tpu_custom_call.1} parent=1 // pred_check
      _
    $region55: #{tpu_custom_call.1} parent=1 // pred_check_branch
      %424 = sbr.rel (0) target = $region57
    $region56: #{tpu_custom_call.1} parent=1 // pred_region
      %425 = dma.done [#allocation5], 256
    $region57: #{tpu_custom_call.1} parent=1 // pred_fallthru
      _
    %426 = vsyncpa [#allocation4], 1
    %427 = vsyncpa [#allocation7], 1
    %428 = vsyncpa [#allocation10], 1
    %429 = vsyncpa [#allocation5], 1

</llo_original>
